<compile_context>
chip_gen: v7x
topology: tpu7x:2x2x1
jax: 0.10.0
libtpu: 0.0.40
codegen_flags: <defaults>
</compile_context>

<pallas_src>
import math

import jax
import jax.numpy as jnp
from jax.experimental import pallas as pl
from jax.experimental.pallas import tpu as pltpu

_TARGET_TILE_BYTES = 2 << 20  # ~2 MiB of output per grid step


def _split_kernel(time_ref, freq_ref, out_ref):
    """grid=(nb, 2): column block j==0 is the sin half, j==1 the cos half.

    time_ref: (tb, 1)    f32 VMEM
    freq_ref: (1, half)  f32 VMEM (constant block index -> fetched once)
    out_ref:  (tb, half) out_dtype VMEM, lane-aligned (half % 128 == 0)
    """
    args = time_ref[...] * freq_ref[...]  # (tb, half) VPU broadcast-multiply
    j = pl.program_id(1)

    @pl.when(j == 0)
    def _():
        out_ref[...] = jnp.sin(args).astype(out_ref.dtype)

    @pl.when(j == 1)
    def _():
        out_ref[...] = jnp.cos(args).astype(out_ref.dtype)


def _fused_kernel(time_ref, freq_ref, out_ref):
    """grid=(nb,): full-width (tb, dim) block, two slice stores (no concat)."""
    half = freq_ref.shape[1]
    args = time_ref[...] * freq_ref[...]
    out_ref[:, :half] = jnp.sin(args).astype(out_ref.dtype)
    out_ref[:, half:] = jnp.cos(args).astype(out_ref.dtype)


def sinusoidal_position_embeddings(
    time: jax.Array,
    dim: int,
    *,
    out_dtype=jnp.float32,
) -> jax.Array:
    """`time`: (B,) float array of timesteps. Returns (B, dim) `out_dtype`."""
    assert dim % 2 == 0 and dim >= 4, "dim must be even and >= 4"
    (B,) = time.shape
    half = dim // 2

    # Frequency table computed once on the XLA side, reused by every tile.
    freqs = jnp.exp(
        jnp.arange(half, dtype=jnp.float32) * (-math.log(10000.0) / (half - 1))
    )

    # dim < 128: output is lane-sparse (masked vst) and the op is tiny; let
    # XLA fuse it instead of paying Pallas launch overhead.
    if dim < 128:
        emb = time.astype(jnp.float32)[:, None] * freqs[None, :]
        return jnp.concatenate(
            [jnp.sin(emb), jnp.cos(emb)], axis=-1
        ).astype(out_dtype)

    # dim-aware batch tile: ~_TARGET_TILE_BYTES of output per grid step,
    # multiple of 8 sublanes, never more rows than round_up(B, 8).
    row_bytes = dim * jnp.dtype(out_dtype).itemsize
    tb = max(8, (_TARGET_TILE_BYTES // row_bytes) // 8 * 8)
    tb = min(tb, (B + 7) // 8 * 8)
    nb = pl.cdiv(B, tb)

    time2d = time.astype(jnp.float32).reshape(B, 1)
    freqs2d = freqs.reshape(1, half)

    if half % 128 == 0:
        # Lane-aligned halves: second parallel axis selects sin vs cos.
        kernel = _split_kernel
        grid = (nb, 2)
        in_specs = [
            pl.BlockSpec((tb, 1), lambda i, j: (i, 0)),     # time rows
            pl.BlockSpec((1, half), lambda i, j: (0, 0)),   # shared freqs
        ]
        out_specs = pl.BlockSpec((tb, half), lambda i, j: (i, j))
        dim_sems = ("parallel", "parallel")
    else:
        kernel = _fused_kernel
        grid = (nb,)
        in_specs = [
            pl.BlockSpec((tb, 1), lambda i: (i, 0)),
            pl.BlockSpec((1, half), lambda i: (0, 0)),
        ]
        out_specs = pl.BlockSpec((tb, dim), lambda i: (i, 0))
        dim_sems = ("parallel",)

    return pl.pallas_call(
        kernel,
        out_shape=jax.ShapeDtypeStruct((B, dim), out_dtype),
        grid_spec=pltpu.PrefetchScalarGridSpec(
            num_scalar_prefetch=0,
            grid=grid,
            in_specs=in_specs,
            out_specs=out_specs,
        ),
        compiler_params=pltpu.CompilerParams(dimension_semantics=dim_sems),
    )(time2d, freqs2d)


def _reference(time: jax.Array, dim: int) -> jax.Array:
    """Pure-JAX reference mirroring the PyTorch forward."""
    half = dim // 2
    emb = math.log(10000.0) / (half - 1)
    emb = jnp.exp(jnp.arange(half, dtype=jnp.float32) * -emb)
    emb = time.astype(jnp.float32)[:, None] * emb[None, :]
    return jnp.concatenate([jnp.sin(emb), jnp.cos(emb)], axis=-1)


if __name__ == "__main__":
    key = jax.random.PRNGKey(0)
    k0, k1, k2 = jax.random.split(key, 3)

    # 1) Tiny diffusion-style case (B=8, dim=32): dispatched to the pure-JAX
    #    fallback (lane-sparse output; XLA fusion wins there).
    B0, D0 = 8, 32
    t0 = jax.random.uniform(k0, (B0,), jnp.float32, minval=0.0, maxval=1000.0)
    o0 = jax.block_until_ready(sinusoidal_position_embeddings(t0, D0))
    assert o0.shape == (B0, D0) and o0.dtype == jnp.float32
    assert jnp.allclose(o0, _reference(t0, D0), atol=1e-5, rtol=1e-5)

    # 2) Pallas split path (half % 128 == 0), ragged batch (B=20, dim=256).
    B1, D1 = 20, 256
    t1 = jax.random.uniform(k1, (B1,), jnp.float32, minval=0.0, maxval=1000.0)
    o1 = jax.block_until_ready(sinusoidal_position_embeddings(t1, D1))
    assert o1.shape == (B1, D1) and o1.dtype == jnp.float32
    assert jnp.allclose(o1, _reference(t1, D1), atol=1e-5, rtol=1e-5)

    # 3) Pallas fused path (dim=128, half=64 not lane-aligned), ragged B=12.
    B2, D2 = 12, 128
    t2 = jax.random.uniform(k2, (B2,), jnp.float32, minval=0.0, maxval=1000.0)
    o2 = jax.block_until_ready(sinusoidal_position_embeddings(t2, D2))
    assert o2.shape == (B2, D2) and o2.dtype == jnp.float32
    assert jnp.allclose(o2, _reference(t2, D2), atol=1e-5, rtol=1e-5)

    print("KERNEL_OK")
</pallas_src>

<mosaic_0001>
module attributes {stable_mosaic.version = 11 : i64} {
  func.func @_split_kernel(%arg0: i32, %arg1: i32, %arg2: memref<24x1xf32, #tpu.memory_space<vmem>>, %arg3: memref<1x128xf32, #tpu.memory_space<vmem>>, %arg4: memref<24x128xf32, #tpu.memory_space<vmem>>) attributes {dimension_semantics = [#tpu.dimension_semantics<parallel>, #tpu.dimension_semantics<parallel>], iteration_bounds = array<i64: 1, 2>, scalar_prefetch = 0 : i64, scratch_operands = 0 : i64, tpu.core_type = #tpu.core_type<tc>, window_params = [{transform_indices = @transform_0, window_bounds = array<i64: 24, 1>}, {pipeline_mode = #tpu.pipeline_mode<synchronous>, transform_indices = @transform_1, window_bounds = array<i64: 1, 128>}, {transform_indices = @transform_2, window_bounds = array<i64: 24, 128>}]} {
    %c0 = arith.constant 0 : index
    %c0_0 = arith.constant 0 : index
    %0 = vector.load %arg2[%c0, %c0_0] : memref<24x1xf32, #tpu.memory_space<vmem>>, vector<24x1xf32>
    %c0_1 = arith.constant 0 : index
    %c0_2 = arith.constant 0 : index
    %1 = vector.load %arg3[%c0_1, %c0_2] : memref<1x128xf32, #tpu.memory_space<vmem>>, vector<1x128xf32>
    %2 = vector.broadcast %0 : vector<24x1xf32> to vector<24x128xf32>
    %3 = vector.broadcast %1 : vector<1x128xf32> to vector<24x128xf32>
    %4 = arith.mulf %2, %3 : vector<24x128xf32>
    %c0_i32 = arith.constant 0 : i32
    %5 = arith.cmpi eq, %arg1, %c0_i32 : i32
    %6 = arith.extui %5 : i1 to i32
    %c0_i32_3 = arith.constant 0 : i32
    %7 = arith.cmpi ne, %6, %c0_i32_3 : i32
    scf.if %7 {
      %11 = math.sin %4 : vector<24x128xf32>
      %c0_5 = arith.constant 0 : index
      %c0_6 = arith.constant 0 : index
      %12 = vector.load %arg4[%c0_5, %c0_6] : memref<24x128xf32, #tpu.memory_space<vmem>>, vector<24x128xf32>
      tpu.vector_store %arg4[%c0_5, %c0_6], %11 {strides = array<i32>} : memref<24x128xf32, #tpu.memory_space<vmem>>, vector<24x128xf32>,
    } else {
    }
    %c1_i32 = arith.constant 1 : i32
    %8 = arith.cmpi eq, %arg1, %c1_i32 : i32
    %9 = arith.extui %8 : i1 to i32
    %c0_i32_4 = arith.constant 0 : i32
    %10 = arith.cmpi ne, %9, %c0_i32_4 : i32
    scf.if %10 {
      %11 = math.cos %4 : vector<24x128xf32>
      %c0_5 = arith.constant 0 : index
      %c0_6 = arith.constant 0 : index
      %12 = vector.load %arg4[%c0_5, %c0_6] : memref<24x128xf32, #tpu.memory_space<vmem>>, vector<24x128xf32>
      tpu.vector_store %arg4[%c0_5, %c0_6], %11 {strides = array<i32>} : memref<24x128xf32, #tpu.memory_space<vmem>>, vector<24x128xf32>,
    } else {
    }
    return
  }
  func.func @transform_0(%arg0: i32, %arg1: i32) -> (i32, i32) {
    %c0_i32 = arith.constant 0 : i32
    %c0_i32_0 = arith.constant 0 : i32
    return %arg0, %c0_i32 : i32, i32
  }
  func.func @transform_1(%arg0: i32, %arg1: i32) -> (i32, i32) {
    %c0_i32 = arith.constant 0 : i32
    %c0_i32_0 = arith.constant 0 : i32
    %c0_i32_1 = arith.constant 0 : i32
    return %c0_i32, %c0_i32_0 : i32, i32
  }
  func.func @transform_2(%arg0: i32, %arg1: i32) -> (i32, i32) {
    %c0_i32 = arith.constant 0 : i32
    return %arg0, %arg1 : i32, i32
  }
}

</mosaic_0001>

<llo_original>
// kernel: tpu_custom_call.1
$region0: #{tpu_custom_call.1}
  #allocation0 [shape = 'u32[]', space=smem, size = 0x4, offset = 0x4, fixed_abs, tag = 'smem constant byte address 0x4 - core index']
  #allocation1 [shape = 'u32[144,128]{1,0:T(1,128)}', space=vmem, size = 0x12000, scoped, tag = 'internal scratch']
  %s0 = inlined_call_operand.vmem [shape: f32[20,1], index: 0, kind: input, shape index: {}]
  %s1 = inlined_call_operand.vmem [shape: f32[1,128], index: 1, kind: input, shape index: {}]
  %s2 = inlined_call_operand.hbm [shape: f32[20,256], index: 2, kind: output, shape index: {}]
  %s3 = sld [smem:[#allocation0]]
  $region49: #{tpu_custom_call.1} parent=0
    _
  %s5 = ssub.s32 1, %s3
  %s6 = scalar_select 0, %s5, %s3
  $region1: #{tpu_custom_call.1} parent=0
    #allocation2 [shape = 'u8[24576]{0}', space=vmem, size = 0x6000, scoped, tag = 'output window, operand 0']
    #allocation3 [shape = 's32[2]{0}', space=sflag, size = 0x8, scoped, tag = 'scoped memory for tpu_custom_call.1']
    %7 = vsyncpa [#allocation3], 0
    %s8 = scalar_lea.sflag [#allocation3], 1
    %9 = vsyncpa %s8, 0
    loop: start=0, step=1, limit=4
    $region2: #{tpu_custom_call.1} parent=1 // loop_pre_header
      _
    $region3: #{tpu_custom_call.1} parent=1 // loop_header
      %s11 = sphi 0, %s15
      %p12 = scmp.ge.s32.totalorder %s11, 4
      %s18 = sphi 0, %s30
      %s19 = sphi 0, %s26
      %s20 = sphi 0, %s18
      %s21 = sphi 0, %s19
      %s22 = sphi 0, %s20
      %s23 = sphi 0, %s21
      %s33 = sphi 0, %s35
      %s36 = sphi 0, %s33
      %s37 = sphi 0, %s36
      %s53 = sphi 0, %s37
      %s57 = sphi 0, %s57
      %s59 = sphi 0, %s57
      %s60 = sphi 0, %s59
      %s74 = sphi 0, %s60
      %s82 = sphi 0, %s84
      %s85 = sphi 0, %s82
      %s86 = sphi 0, %s85
      %s102 = sphi 0, %s86
    $region4: #{tpu_custom_call.1} parent=1 // loop_header_branch
      %14 = sbr.rel (%p12) target = $region8
    $region5: #{tpu_custom_call.1} parent=1 // loop_body
      %s16 = ssub.s32 %s11, 1
      %s17 = ssub.s32 %s11, 2
      %s24 = sadd.s32 1, %s19
      %p25 = scmp.ge.s32.totalorder %s24, 2
      %s26 = scalar_select %p25, 0, %s24
      %s27 = sadd.s32 1, %s18
      %s28 = scalar_select %p25, %s27, %s18
      %p29 = scmp.ge.s32.totalorder %s28, 1
      %s30 = scalar_select %p29, 0, %s28
      %s31 = ssub.s32 %s18, %s30
      %p32 = scmp.eq.s32.totalorder %s31, 0
      %s34 = sadd.s32 %s33, 1
      %s35 = scalar_select %p32, %s33, %s34
      %p38 = pneg %p32
      %p39 = scmp.eq.s32.totalorder %s11, 1
      %p40 = por %p38, %p39
      %p41 = scmp.ne.s32.totalorder %s33, %s36
      %p42 = scmp.eq.s32.totalorder %s11, 0
      %p43 = por %p41, %p42
      %p44 = scmp.ne.s32.totalorder %s33, %s36
      %p45 = scmp.eq.s32.totalorder %s16, 1
      %p46 = por %p44, %p45
      %p47 = scmp.ne.s32.totalorder %s36, %s37
      %p48 = scmp.eq.s32.totalorder %s16, 0
      %p49 = por %p47, %p48
      %p50 = scmp.ne.s32.totalorder %s36, %s37
      %p51 = scmp.eq.s32.totalorder %s17, 1
      %p52 = por %p50, %p51
      %p54 = scmp.ne.s32.totalorder %s37, %s53
      %p55 = scmp.eq.s32.totalorder %s17, 0
      %p56 = por %p54, %p55
      %s58 = sadd.s32 %s57, 1
      %p61 = scmp.eq.s32.totalorder %s11, 1
      %p62 = scmp.ne.s32.totalorder %s57, %s59
      %p63 = scmp.eq.s32.totalorder %s11, 0
      %p64 = por %p62, %p63
      %p65 = scmp.ne.s32.totalorder %s57, %s59
      %p66 = scmp.eq.s32.totalorder %s16, 1
      %p67 = por %p65, %p66
      %p68 = scmp.ne.s32.totalorder %s59, %s60
      %p69 = scmp.eq.s32.totalorder %s16, 0
      %p70 = por %p68, %p69
      %p71 = scmp.ne.s32.totalorder %s59, %s60
      %p72 = scmp.eq.s32.totalorder %s17, 1
      %p73 = por %p71, %p72
      %p75 = scmp.ne.s32.totalorder %s60, %s74
      %p76 = scmp.eq.s32.totalorder %s17, 0
      %p77 = por %p75, %p76
      %s78 = ssub.s32 %s18, %s30
      %s79 = ssub.s32 %s19, %s26
      %s80 = sor.u32 %s78, %s79
      %p81 = scmp.eq.s32.totalorder %s80, 0
      %s83 = sadd.s32 %s82, 1
      %s84 = scalar_select %p81, %s82, %s83
      %p87 = pneg %p81
      %p88 = scmp.eq.s32.totalorder %s11, 1
      %p89 = por %p87, %p88
      %p90 = scmp.ne.s32.totalorder %s82, %s85
      %p91 = scmp.eq.s32.totalorder %s11, 0
      %p92 = por %p90, %p91
      %p93 = scmp.ne.s32.totalorder %s82, %s85
      %p94 = scmp.eq.s32.totalorder %s16, 1
      %p95 = por %p93, %p94
      %p96 = scmp.ne.s32.totalorder %s85, %s86
      %p97 = scmp.eq.s32.totalorder %s16, 0
      %p98 = por %p96, %p97
      %p99 = scmp.ne.s32.totalorder %s85, %s86
      %p100 = scmp.eq.s32.totalorder %s17, 1
      %p101 = por %p99, %p100
      %p103 = scmp.ne.s32.totalorder %s86, %s102
      %p104 = scmp.eq.s32.totalorder %s17, 0
      %p105 = por %p103, %p104
      %p106 = scmp.le.s32.totalorder 1, %s11
      %p107 = scmp.lt.s32.totalorder %s11, 3
      %p108 = pnand %p106, %p107
      %p109 = pneg %p108
      // Predicated region
      $region9: #{tpu_custom_call.1} parent=5 // pred_check
        _
      $region10: #{tpu_custom_call.1} parent=5 // pred_check_branch
        %111 = sbr.rel (%p108) target = $region12
      $region11: #{tpu_custom_call.1} parent=5 // pred_region
        %s112 = ssub.s32 %s11, 1
        // Predicated region
        $region13: #{tpu_custom_call.1} parent=11 // pred_check
          %p113 = pneg %p49
        $region14: #{tpu_custom_call.1} parent=11 // pred_check_branch
          %115 = sbr.rel (%p113) target = $region16
        $region15: #{tpu_custom_call.1} parent=11 // pred_region
          %s116 = smul.u32 3, %s20
          %p117 = scmp.lt.s32.totalorder %s116, 2
          %s118 = scalar_select %p117, %s116, 2
          %s119 = smul.addr %s118, 8
          %s120 = scalar_lea.vmem %s0, %s119
          %s121 = smul.u32 3, %s20
        $region16: #{tpu_custom_call.1} parent=11 // pred_fallthru
          _
        // Predicated region
        $region17: #{tpu_custom_call.1} parent=11 // pred_check
          %p122 = pneg %p70
        $region18: #{tpu_custom_call.1} parent=11 // pred_check_branch
          %124 = sbr.rel (%p122) target = $region20
        $region19: #{tpu_custom_call.1} parent=11 // pred_region
          _
        $region20: #{tpu_custom_call.1} parent=11 // pred_fallthru
          _
      $region12: #{tpu_custom_call.1} parent=5 // pred_fallthru
        _
      %p125 = scmp.lt.s32.totalorder %s11, 2
      // Predicated region
      $region21: #{tpu_custom_call.1} parent=5 // pred_check
        %p126 = pneg %p125
      $region22: #{tpu_custom_call.1} parent=5 // pred_check_branch
        %128 = sbr.rel (%p126) target = $region24
      $region23: #{tpu_custom_call.1} parent=5 // pred_region
        _
      $region24: #{tpu_custom_call.1} parent=5 // pred_fallthru
        _
      %p129 = scmp.le.s32.totalorder 1, %s11
      %p130 = scmp.lt.s32.totalorder %s11, 3
      %p131 = pnand %p129, %p130
      %p132 = pneg %p131
      // Predicated region
      $region25: #{tpu_custom_call.1} parent=5 // pred_check
        _
      $region26: #{tpu_custom_call.1} parent=5 // pred_check_branch
        %134 = sbr.rel (%p131) target = $region28
      $region27: #{tpu_custom_call.1} parent=5 // pred_region
        %s135 = ssub.s32 %s11, 1
        %s136 = smul.u32 3, %s20
        %p137 = scmp.lt.s32.totalorder %s136, 2
        %s138 = scalar_select %p137, %s136, 2
        %s139 = smul.addr %s138, 8
        %s140 = scalar_lea.vmem %s0, %s139
        %p141 = pneg %p49
        %p142 = pneg %p46
        %p143 = pneg %p70
        %p144 = pneg %p67
        %p145 = pneg %p98
        %p146 = pneg %p95
        %s147 = sand.u32 %s85, 1
        %s148 = scalar_lea.sflag [#allocation3], %s147
        %s149 = sand.u32 %s85, 1
        %s150 = smul.addr %s149, 24
        %s151 = scalar_lea.vmem [#allocation2], %s150
        %s152 = smul.u32 3, %s20
        %p153 = scmp.lt.s32.totalorder %s152, 2
        %s154 = scalar_select %p153, %s152, 2
        %s155 = smul.addr %s154, 8
        %s156 = scalar_lea.vmem %s0, %s155
        %s157 = smul.u32 3, %s20
        %s158 = smul.u32 3, %s20
        %v159 = vld [vmem:[%s156] sm:$0xff]
        %v160 = vld [vmem:[%s156 + $0x8] sm:$0xff]
        %v161 = vld [vmem:[%s156 + $0x10] sm:$0xff]
        %v162 = vld [vmem:[%s1] sm:$0x1]
        %164 = vset.pattern.permute.xlu0 0
        %165 = vperm.xlu0 %164, %v159
        %v166 = vpop.permute.xlu0 %165
        %169 = vset.pattern.permute.xlu0 0
        %170 = vperm.xlu0 %169, %v160
        %v171 = vpop.permute.xlu0 %170
        %174 = vset.pattern.permute.xlu0 0
        %175 = vperm.xlu0 %174, %v161
        %v176 = vpop.permute.xlu0 %175
        %v179 = vlaneseq
        %v180 = vshrl.u32 %v179, 7
        %v181 = vsub.s32 0, %v180
        %v182 = vrot.slane %v162, %v181
        %v184 = vmul.f32 %v166, %v182
        %v185 = vmul.f32 %v171, %v182
        %v186 = vmul.f32 %v176, %v182
        %p187 = scmp.eq.s32.totalorder %s21, 0
        // Predicated region
        $region29: #{tpu_custom_call.1} parent=27 // pred_check
          %p188 = pneg %p187
        $region30: #{tpu_custom_call.1} parent=27 // pred_check_branch
          %190 = sbr.rel (%p188) target = $region32
        $region31: #{tpu_custom_call.1} parent=27 // pred_region
          %v191 = vand.u32 2147483647, %v184
          %vm192 = vcmp.le.f32.partialorder %v191, 0.7853982
          %vm193 = vcmp.lt.s32.totalorder %v184, 0
          %v194 = vand.u32 %v184, 2139095040
          %v195 = vshrl.u32 %v194, 23
          %v196 = vsub.s32 %v195, 127
          %v197 = vand.u32 2147483647, %v184
          %v198 = vand.u32 %v197, 8388607
          %v199 = vor.u32 %v198, 8388608
          %v200 = vsub.s32 0, %v199
          %v201 = vadd.s32 %v196, 1
          %vm202 = vcmp.gt.s32.totalorder %v201, 0
          %v203 = vsel %vm202, %v201, 0
          %v204 = vshrl.u32 %v203, 5
          %v205 = vand.u32 %v203, 31
          %v206 = vsub.s32 32, %v205
          %v207 = vshrl.u32 683565275, %v206
          %v208 = vshll.u32 683565275, %v205
          %v209 = vshrl.u32 2475754826, %v206
          %v210 = vor.u32 %v208, %v209
          %v211 = vshll.u32 2475754826, %v205
          %v212 = vshrl.u32 2131351028, %v206
          %v213 = vor.u32 %v211, %v212
          %v214 = vshll.u32 2131351028, %v205
          %v215 = vshrl.u32 2102212464, %v206
          %v216 = vor.u32 %v214, %v215
          %v217 = vshll.u32 2102212464, %v205
          %v218 = vshrl.u32 920167782, %v206
          %v219 = vor.u32 %v217, %v218
          %v220 = vshll.u32 920167782, %v205
          %v221 = vshrl.u32 1326507024, %v206
          %v222 = vor.u32 %v220, %v221
          %vm223 = vcmp.lt.s32.totalorder %v204, 1
          %vm224 = vcmp.lt.s32.totalorder %v204, 2
          %vm225 = vcmp.lt.s32.totalorder %v204, 3
          %vm226 = vcmp.lt.s32.totalorder %v204, 4
          %v227 = vsel %vm223, %v207, %v210
          %v228 = vsel %vm226, %v216, 2102212464
          %v229 = vsel %vm225, %v213, %v228
          %v230 = vsel %vm224, %v227, %v229
          %v231 = vsel %vm223, %v210, %v213
          %v232 = vsel %vm226, %v219, 920167782
          %v233 = vsel %vm225, %v216, %v232
          %v234 = vsel %vm224, %v231, %v233
          %v235 = vsel %vm223, %v213, %v216
          %v236 = vsel %vm226, %v222, 1326507024
          %v237 = vsel %vm225, %v219, %v236
          %v238 = vsel %vm224, %v235, %v237
          %v239 = vshll.u32 %v199, 8
          %v240 = vmul.u32.u64.compose %v239, %v238
          %v241 = vextract.low.u32 %v240
          %v242 = vextract.high.u32 %v240
          %v243 = vmul.u32.u64.compose %v239, %v234
          %v244 = vextract.low.u32 %v243
          %v245 = vextract.high.u32 %v243
          %v246 = vmul.u32 %v239, %v230
          %v247 = vadd.s32 %v242, %v244
          %vm248 = vc.u32 %v242, %v244
          %v249 = vadd.s32 %v245, 1
          %v250 = vsel %vm248, %v249, %v245
          %v251 = vadd.s32 %v246, %v250
          %v252 = vadd.s32 %v251, 536870912
          %v253 = vshrl.u32 %v252, 30
          %v254 = vshll.u32 %v253, 30
          %v255 = vsub.s32 %v251, %v254
          %vm256 = vcmp.lt.s32.totalorder %v255, 0
          %v257 = vsub.s32 0, %v255
          %v258 = vsel %vm256, %v257, %v255
          %v259 = vclz %v258
          %v260 = vsub.s32 %v259, 2
          %vm261 = vcmp.gt.s32.totalorder 0, %v260
          %v262 = vsel %vm261, 0, %v260
          %v263 = vsub.s32 32, %v262
          %v264 = vshll.u32 %v255, %v262
          %v265 = vshrl.u32 %v247, %v263
          %v266 = vor.u32 %v264, %v265
          %v267 = vsub.s32 4294967266, %v262
          %v268 = vadd.s32 %v267, 127
          %v269 = vshll.u32 %v268, 23
          %v270 = vor.u32 4788187, %v269
          %v271 = vand.u32 2147483647, %v270
          %v273 = vcvt.s32.f32 %v266
          %v274 = vmul.f32 %v273, %v271
          %v275 = vxor.u32 %v274, 2147483648
          %v276 = vsel %vm193, %v275, %v274
          %v277 = vsub.s32 4, %v253
          %v278 = vsel %vm193, %v277, %v253
          %v279 = vsel %vm192, %v184, %v276
          %v280 = vsel %vm192, 0, %v278
          %v281 = vcosq.f32.pop %v279
          %v282 = vsinq.f32.pop %v279
          %vm283 = vweird.f32 %v184
          %v284 = vadd.s32 %v280, 3
          %v285 = vand.u32 %v284, 3
          %vm286 = vcmp.lt.s32.totalorder %v285, 2
          %vm287 = vcmp.eq.s32.totalorder %v285, 0
          %v288 = vxor.u32 %v282, 2147483648
          %v289 = vsel %vm287, %v281, %v288
          %vm290 = vcmp.eq.s32.totalorder %v285, 2
          %v291 = vxor.u32 %v281, 2147483648
          %v292 = vsel %vm290, %v291, %v282
          %v293 = vsel %vm286, %v289, %v292
          %v294 = vsel %vm283, nan, %v293
          %v295 = vand.u32 2147483647, %v185
          %vm296 = vcmp.le.f32.partialorder %v295, 0.7853982
          %vm297 = vcmp.lt.s32.totalorder %v185, 0
          %v298 = vand.u32 %v185, 2139095040
          %v299 = vshrl.u32 %v298, 23
          %v300 = vsub.s32 %v299, 127
          %v301 = vand.u32 2147483647, %v185
          %v302 = vand.u32 %v301, 8388607
          %v303 = vor.u32 %v302, 8388608
          %v304 = vsub.s32 0, %v303
          %v305 = vadd.s32 %v300, 1
          %vm306 = vcmp.gt.s32.totalorder %v305, 0
          %v307 = vsel %vm306, %v305, 0
          %v308 = vshrl.u32 %v307, 5
          %v309 = vand.u32 %v307, 31
          %v310 = vsub.s32 32, %v309
          %v311 = vshrl.u32 683565275, %v310
          %v312 = vshll.u32 683565275, %v309
          %v313 = vshrl.u32 2475754826, %v310
          %v314 = vor.u32 %v312, %v313
          %v315 = vshll.u32 2475754826, %v309
          %v316 = vshrl.u32 2131351028, %v310
          %v317 = vor.u32 %v315, %v316
          %v318 = vshll.u32 2131351028, %v309
          %v319 = vshrl.u32 2102212464, %v310
          %v320 = vor.u32 %v318, %v319
          %v321 = vshll.u32 2102212464, %v309
          %v322 = vshrl.u32 920167782, %v310
          %v323 = vor.u32 %v321, %v322
          %v324 = vshll.u32 920167782, %v309
          %v325 = vshrl.u32 1326507024, %v310
          %v326 = vor.u32 %v324, %v325
          %vm327 = vcmp.lt.s32.totalorder %v308, 1
          %vm328 = vcmp.lt.s32.totalorder %v308, 2
          %vm329 = vcmp.lt.s32.totalorder %v308, 3
          %vm330 = vcmp.lt.s32.totalorder %v308, 4
          %v331 = vsel %vm327, %v311, %v314
          %v332 = vsel %vm330, %v320, 2102212464
          %v333 = vsel %vm329, %v317, %v332
          %v334 = vsel %vm328, %v331, %v333
          %v335 = vsel %vm327, %v314, %v317
          %v336 = vsel %vm330, %v323, 920167782
          %v337 = vsel %vm329, %v320, %v336
          %v338 = vsel %vm328, %v335, %v337
          %v339 = vsel %vm327, %v317, %v320
          %v340 = vsel %vm330, %v326, 1326507024
          %v341 = vsel %vm329, %v323, %v340
          %v342 = vsel %vm328, %v339, %v341
          %v343 = vshll.u32 %v303, 8
          %v344 = vmul.u32.u64.compose %v343, %v342
          %v345 = vextract.low.u32 %v344
          %v346 = vextract.high.u32 %v344
          %v347 = vmul.u32.u64.compose %v343, %v338
          %v348 = vextract.low.u32 %v347
          %v349 = vextract.high.u32 %v347
          %v350 = vmul.u32 %v343, %v334
          %v351 = vadd.s32 %v346, %v348
          %vm352 = vc.u32 %v346, %v348
          %v353 = vadd.s32 %v349, 1
          %v354 = vsel %vm352, %v353, %v349
          %v355 = vadd.s32 %v350, %v354
          %v356 = vadd.s32 %v355, 536870912
          %v357 = vshrl.u32 %v356, 30
          %v358 = vshll.u32 %v357, 30
          %v359 = vsub.s32 %v355, %v358
          %vm360 = vcmp.lt.s32.totalorder %v359, 0
          %v361 = vsub.s32 0, %v359
          %v362 = vsel %vm360, %v361, %v359
          %v363 = vclz %v362
          %v364 = vsub.s32 %v363, 2
          %vm365 = vcmp.gt.s32.totalorder 0, %v364
          %v366 = vsel %vm365, 0, %v364
          %v367 = vsub.s32 32, %v366
          %v368 = vshll.u32 %v359, %v366
          %v369 = vshrl.u32 %v351, %v367
          %v370 = vor.u32 %v368, %v369
          %v371 = vsub.s32 4294967266, %v366
          %v372 = vadd.s32 %v371, 127
          %v373 = vshll.u32 %v372, 23
          %v374 = vor.u32 4788187, %v373
          %v375 = vand.u32 2147483647, %v374
          %v377 = vcvt.s32.f32 %v370
          %v378 = vmul.f32 %v377, %v375
          %v379 = vxor.u32 %v378, 2147483648
          %v380 = vsel %vm297, %v379, %v378
          %v381 = vsub.s32 4, %v357
          %v382 = vsel %vm297, %v381, %v357
          %v383 = vsel %vm296, %v185, %v380
          %v384 = vsel %vm296, 0, %v382
          %v385 = vcosq.f32.pop %v383
          %v386 = vsinq.f32.pop %v383
          %vm387 = vweird.f32 %v185
          %v388 = vadd.s32 %v384, 3
          %v389 = vand.u32 %v388, 3
          %vm390 = vcmp.lt.s32.totalorder %v389, 2
          %vm391 = vcmp.eq.s32.totalorder %v389, 0
          %v392 = vxor.u32 %v386, 2147483648
          %v393 = vsel %vm391, %v385, %v392
          %vm394 = vcmp.eq.s32.totalorder %v389, 2
          %v395 = vxor.u32 %v385, 2147483648
          %v396 = vsel %vm394, %v395, %v386
          %v397 = vsel %vm390, %v393, %v396
          %v398 = vsel %vm387, nan, %v397
          %v399 = vand.u32 2147483647, %v186
          %vm400 = vcmp.le.f32.partialorder %v399, 0.7853982
          %vm401 = vcmp.lt.s32.totalorder %v186, 0
          %v402 = vand.u32 %v186, 2139095040
          %v403 = vshrl.u32 %v402, 23
          %v404 = vsub.s32 %v403, 127
          %v405 = vand.u32 2147483647, %v186
          %v406 = vand.u32 %v405, 8388607
          %v407 = vor.u32 %v406, 8388608
          %v408 = vsub.s32 0, %v407
          %v409 = vadd.s32 %v404, 1
          %vm410 = vcmp.gt.s32.totalorder %v409, 0
          %v411 = vsel %vm410, %v409, 0
          %v412 = vshrl.u32 %v411, 5
          %v413 = vand.u32 %v411, 31
          %v414 = vsub.s32 32, %v413
          %v415 = vshrl.u32 683565275, %v414
          %v416 = vshll.u32 683565275, %v413
          %v417 = vshrl.u32 2475754826, %v414
          %v418 = vor.u32 %v416, %v417
          %v419 = vshll.u32 2475754826, %v413
          %v420 = vshrl.u32 2131351028, %v414
          %v421 = vor.u32 %v419, %v420
          %v422 = vshll.u32 2131351028, %v413
          %v423 = vshrl.u32 2102212464, %v414
          %v424 = vor.u32 %v422, %v423
          %v425 = vshll.u32 2102212464, %v413
          %v426 = vshrl.u32 920167782, %v414
          %v427 = vor.u32 %v425, %v426
          %v428 = vshll.u32 920167782, %v413
          %v429 = vshrl.u32 1326507024, %v414
          %v430 = vor.u32 %v428, %v429
          %vm431 = vcmp.lt.s32.totalorder %v412, 1
          %vm432 = vcmp.lt.s32.totalorder %v412, 2
          %vm433 = vcmp.lt.s32.totalorder %v412, 3
          %vm434 = vcmp.lt.s32.totalorder %v412, 4
          %v435 = vsel %vm431, %v415, %v418
          %v436 = vsel %vm434, %v424, 2102212464
          %v437 = vsel %vm433, %v421, %v436
          %v438 = vsel %vm432, %v435, %v437
          %v439 = vsel %vm431, %v418, %v421
          %v440 = vsel %vm434, %v427, 920167782
          %v441 = vsel %vm433, %v424, %v440
          %v442 = vsel %vm432, %v439, %v441
          %v443 = vsel %vm431, %v421, %v424
          %v444 = vsel %vm434, %v430, 1326507024
          %v445 = vsel %vm433, %v427, %v444
          %v446 = vsel %vm432, %v443, %v445
          %v447 = vshll.u32 %v407, 8
          %v448 = vmul.u32.u64.compose %v447, %v446
          %v449 = vextract.low.u32 %v448
          %v450 = vextract.high.u32 %v448
          %v451 = vmul.u32.u64.compose %v447, %v442
          %v452 = vextract.low.u32 %v451
          %v453 = vextract.high.u32 %v451
          %v454 = vmul.u32 %v447, %v438
          %v455 = vadd.s32 %v450, %v452
          %vm456 = vc.u32 %v450, %v452
          %v457 = vadd.s32 %v453, 1
          %v458 = vsel %vm456, %v457, %v453
          %v459 = vadd.s32 %v454, %v458
          %v460 = vadd.s32 %v459, 536870912
          %v461 = vshrl.u32 %v460, 30
          %v462 = vshll.u32 %v461, 30
          %v463 = vsub.s32 %v459, %v462
          %vm464 = vcmp.lt.s32.totalorder %v463, 0
          %v465 = vsub.s32 0, %v463
          %v466 = vsel %vm464, %v465, %v463
          %v467 = vclz %v466
          %v468 = vsub.s32 %v467, 2
          %vm469 = vcmp.gt.s32.totalorder 0, %v468
          %v470 = vsel %vm469, 0, %v468
          %v471 = vsub.s32 32, %v470
          %v472 = vshll.u32 %v463, %v470
          %v473 = vshrl.u32 %v455, %v471
          %v474 = vor.u32 %v472, %v473
          %v475 = vsub.s32 4294967266, %v470
          %v476 = vadd.s32 %v475, 127
          %v477 = vshll.u32 %v476, 23
          %v478 = vor.u32 4788187, %v477
          %v479 = vand.u32 2147483647, %v478
          %v481 = vcvt.s32.f32 %v474
          %v482 = vmul.f32 %v481, %v479
          %v483 = vxor.u32 %v482, 2147483648
          %v484 = vsel %vm401, %v483, %v482
          %v485 = vsub.s32 4, %v461
          %v486 = vsel %vm401, %v485, %v461
          %v487 = vsel %vm400, %v186, %v484
          %v488 = vsel %vm400, 0, %v486
          %v489 = vcosq.f32.pop %v487
          %v490 = vsinq.f32.pop %v487
          %vm491 = vweird.f32 %v186
          %v492 = vadd.s32 %v488, 3
          %v493 = vand.u32 %v492, 3
          %vm494 = vcmp.lt.s32.totalorder %v493, 2
          %vm495 = vcmp.eq.s32.totalorder %v493, 0
          %v496 = vxor.u32 %v490, 2147483648
          %v497 = vsel %vm495, %v489, %v496
          %vm498 = vcmp.eq.s32.totalorder %v493, 2
          %v499 = vxor.u32 %v489, 2147483648
          %v500 = vsel %vm498, %v499, %v490
          %v501 = vsel %vm494, %v497, %v500
          %v502 = vsel %vm491, nan, %v501
          %503 = vst [vmem:[%s151] sm:$0xff] %v294
          %504 = vst [vmem:[%s151 + $0x8] sm:$0xff] %v398
          %505 = vst [vmem:[%s151 + $0x10] sm:$0xff] %v502
        $region32: #{tpu_custom_call.1} parent=27 // pred_fallthru
          _
        %p506 = scmp.eq.s32.totalorder %s21, 1
        // Predicated region
        $region33: #{tpu_custom_call.1} parent=27 // pred_check
          %p507 = pneg %p506
        $region34: #{tpu_custom_call.1} parent=27 // pred_check_branch
          %509 = sbr.rel (%p507) target = $region36
        $region35: #{tpu_custom_call.1} parent=27 // pred_region
          %v510 = vand.u32 2147483647, %v184
          %vm511 = vcmp.le.f32.partialorder %v510, 0.7853982
          %vm512 = vcmp.lt.s32.totalorder %v184, 0
          %v513 = vand.u32 %v184, 2139095040
          %v514 = vshrl.u32 %v513, 23
          %v515 = vsub.s32 %v514, 127
          %v516 = vand.u32 2147483647, %v184
          %v517 = vand.u32 %v516, 8388607
          %v518 = vor.u32 %v517, 8388608
          %v519 = vsub.s32 0, %v518
          %v520 = vadd.s32 %v515, 1
          %vm521 = vcmp.gt.s32.totalorder %v520, 0
          %v522 = vsel %vm521, %v520, 0
          %v523 = vshrl.u32 %v522, 5
          %v524 = vand.u32 %v522, 31
          %v525 = vsub.s32 32, %v524
          %v526 = vshrl.u32 683565275, %v525
          %v527 = vshll.u32 683565275, %v524
          %v528 = vshrl.u32 2475754826, %v525
          %v529 = vor.u32 %v527, %v528
          %v530 = vshll.u32 2475754826, %v524
          %v531 = vshrl.u32 2131351028, %v525
          %v532 = vor.u32 %v530, %v531
          %v533 = vshll.u32 2131351028, %v524
          %v534 = vshrl.u32 2102212464, %v525
          %v535 = vor.u32 %v533, %v534
          %v536 = vshll.u32 2102212464, %v524
          %v537 = vshrl.u32 920167782, %v525
          %v538 = vor.u32 %v536, %v537
          %v539 = vshll.u32 920167782, %v524
          %v540 = vshrl.u32 1326507024, %v525
          %v541 = vor.u32 %v539, %v540
          %vm542 = vcmp.lt.s32.totalorder %v523, 1
          %vm543 = vcmp.lt.s32.totalorder %v523, 2
          %vm544 = vcmp.lt.s32.totalorder %v523, 3
          %vm545 = vcmp.lt.s32.totalorder %v523, 4
          %v546 = vsel %vm542, %v526, %v529
          %v547 = vsel %vm545, %v535, 2102212464
          %v548 = vsel %vm544, %v532, %v547
          %v549 = vsel %vm543, %v546, %v548
          %v550 = vsel %vm542, %v529, %v532
          %v551 = vsel %vm545, %v538, 920167782
          %v552 = vsel %vm544, %v535, %v551
          %v553 = vsel %vm543, %v550, %v552
          %v554 = vsel %vm542, %v532, %v535
          %v555 = vsel %vm545, %v541, 1326507024
          %v556 = vsel %vm544, %v538, %v555
          %v557 = vsel %vm543, %v554, %v556
          %v558 = vshll.u32 %v518, 8
          %v559 = vmul.u32.u64.compose %v558, %v557
          %v560 = vextract.low.u32 %v559
          %v561 = vextract.high.u32 %v559
          %v562 = vmul.u32.u64.compose %v558, %v553
          %v563 = vextract.low.u32 %v562
          %v564 = vextract.high.u32 %v562
          %v565 = vmul.u32 %v558, %v549
          %v566 = vadd.s32 %v561, %v563
          %vm567 = vc.u32 %v561, %v563
          %v568 = vadd.s32 %v564, 1
          %v569 = vsel %vm567, %v568, %v564
          %v570 = vadd.s32 %v565, %v569
          %v571 = vadd.s32 %v570, 536870912
          %v572 = vshrl.u32 %v571, 30
          %v573 = vshll.u32 %v572, 30
          %v574 = vsub.s32 %v570, %v573
          %vm575 = vcmp.lt.s32.totalorder %v574, 0
          %v576 = vsub.s32 0, %v574
          %v577 = vsel %vm575, %v576, %v574
          %v578 = vclz %v577
          %v579 = vsub.s32 %v578, 2
          %vm580 = vcmp.gt.s32.totalorder 0, %v579
          %v581 = vsel %vm580, 0, %v579
          %v582 = vsub.s32 32, %v581
          %v583 = vshll.u32 %v574, %v581
          %v584 = vshrl.u32 %v566, %v582
          %v585 = vor.u32 %v583, %v584
          %v586 = vsub.s32 4294967266, %v581
          %v587 = vadd.s32 %v586, 127
          %v588 = vshll.u32 %v587, 23
          %v589 = vor.u32 4788187, %v588
          %v590 = vand.u32 2147483647, %v589
          %v592 = vcvt.s32.f32 %v585
          %v593 = vmul.f32 %v592, %v590
          %v594 = vxor.u32 %v593, 2147483648
          %v595 = vsel %vm512, %v594, %v593
          %v596 = vsub.s32 4, %v572
          %v597 = vsel %vm512, %v596, %v572
          %v598 = vsel %vm511, %v184, %v595
          %v599 = vsel %vm511, 0, %v597
          %v600 = vcosq.f32.pop %v598
          %v601 = vsinq.f32.pop %v598
          %vm602 = vweird.f32 %v184
          %v603 = vand.u32 %v599, 3
          %vm604 = vcmp.lt.s32.totalorder %v603, 2
          %vm605 = vcmp.eq.s32.totalorder %v603, 0
          %v606 = vxor.u32 %v601, 2147483648
          %v607 = vsel %vm605, %v600, %v606
          %vm608 = vcmp.eq.s32.totalorder %v603, 2
          %v609 = vxor.u32 %v600, 2147483648
          %v610 = vsel %vm608, %v609, %v601
          %v611 = vsel %vm604, %v607, %v610
          %v612 = vsel %vm602, nan, %v611
          %v613 = vand.u32 2147483647, %v185
          %vm614 = vcmp.le.f32.partialorder %v613, 0.7853982
          %vm615 = vcmp.lt.s32.totalorder %v185, 0
          %v616 = vand.u32 %v185, 2139095040
          %v617 = vshrl.u32 %v616, 23
          %v618 = vsub.s32 %v617, 127
          %v619 = vand.u32 2147483647, %v185
          %v620 = vand.u32 %v619, 8388607
          %v621 = vor.u32 %v620, 8388608
          %v622 = vsub.s32 0, %v621
          %v623 = vadd.s32 %v618, 1
          %vm624 = vcmp.gt.s32.totalorder %v623, 0
          %v625 = vsel %vm624, %v623, 0
          %v626 = vshrl.u32 %v625, 5
          %v627 = vand.u32 %v625, 31
          %v628 = vsub.s32 32, %v627
          %v629 = vshrl.u32 683565275, %v628
          %v630 = vshll.u32 683565275, %v627
          %v631 = vshrl.u32 2475754826, %v628
          %v632 = vor.u32 %v630, %v631
          %v633 = vshll.u32 2475754826, %v627
          %v634 = vshrl.u32 2131351028, %v628
          %v635 = vor.u32 %v633, %v634
          %v636 = vshll.u32 2131351028, %v627
          %v637 = vshrl.u32 2102212464, %v628
          %v638 = vor.u32 %v636, %v637
          %v639 = vshll.u32 2102212464, %v627
          %v640 = vshrl.u32 920167782, %v628
          %v641 = vor.u32 %v639, %v640
          %v642 = vshll.u32 920167782, %v627
          %v643 = vshrl.u32 1326507024, %v628
          %v644 = vor.u32 %v642, %v643
          %vm645 = vcmp.lt.s32.totalorder %v626, 1
          %vm646 = vcmp.lt.s32.totalorder %v626, 2
          %vm647 = vcmp.lt.s32.totalorder %v626, 3
          %vm648 = vcmp.lt.s32.totalorder %v626, 4
          %v649 = vsel %vm645, %v629, %v632
          %v650 = vsel %vm648, %v638, 2102212464
          %v651 = vsel %vm647, %v635, %v650
          %v652 = vsel %vm646, %v649, %v651
          %v653 = vsel %vm645, %v632, %v635
          %v654 = vsel %vm648, %v641, 920167782
          %v655 = vsel %vm647, %v638, %v654
          %v656 = vsel %vm646, %v653, %v655
          %v657 = vsel %vm645, %v635, %v638
          %v658 = vsel %vm648, %v644, 1326507024
          %v659 = vsel %vm647, %v641, %v658
          %v660 = vsel %vm646, %v657, %v659
          %v661 = vshll.u32 %v621, 8
          %v662 = vmul.u32.u64.compose %v661, %v660
          %v663 = vextract.low.u32 %v662
          %v664 = vextract.high.u32 %v662
          %v665 = vmul.u32.u64.compose %v661, %v656
          %v666 = vextract.low.u32 %v665
          %v667 = vextract.high.u32 %v665
          %v668 = vmul.u32 %v661, %v652
          %v669 = vadd.s32 %v664, %v666
          %vm670 = vc.u32 %v664, %v666
          %v671 = vadd.s32 %v667, 1
          %v672 = vsel %vm670, %v671, %v667
          %v673 = vadd.s32 %v668, %v672
          %v674 = vadd.s32 %v673, 536870912
          %v675 = vshrl.u32 %v674, 30
          %v676 = vshll.u32 %v675, 30
          %v677 = vsub.s32 %v673, %v676
          %vm678 = vcmp.lt.s32.totalorder %v677, 0
          %v679 = vsub.s32 0, %v677
          %v680 = vsel %vm678, %v679, %v677
          %v681 = vclz %v680
          %v682 = vsub.s32 %v681, 2
          %vm683 = vcmp.gt.s32.totalorder 0, %v682
          %v684 = vsel %vm683, 0, %v682
          %v685 = vsub.s32 32, %v684
          %v686 = vshll.u32 %v677, %v684
          %v687 = vshrl.u32 %v669, %v685
          %v688 = vor.u32 %v686, %v687
          %v689 = vsub.s32 4294967266, %v684
          %v690 = vadd.s32 %v689, 127
          %v691 = vshll.u32 %v690, 23
          %v692 = vor.u32 4788187, %v691
          %v693 = vand.u32 2147483647, %v692
          %v695 = vcvt.s32.f32 %v688
          %v696 = vmul.f32 %v695, %v693
          %v697 = vxor.u32 %v696, 2147483648
          %v698 = vsel %vm615, %v697, %v696
          %v699 = vsub.s32 4, %v675
          %v700 = vsel %vm615, %v699, %v675
          %v701 = vsel %vm614, %v185, %v698
          %v702 = vsel %vm614, 0, %v700
          %v703 = vcosq.f32.pop %v701
          %v704 = vsinq.f32.pop %v701
          %vm705 = vweird.f32 %v185
          %v706 = vand.u32 %v702, 3
          %vm707 = vcmp.lt.s32.totalorder %v706, 2
          %vm708 = vcmp.eq.s32.totalorder %v706, 0
          %v709 = vxor.u32 %v704, 2147483648
          %v710 = vsel %vm708, %v703, %v709
          %vm711 = vcmp.eq.s32.totalorder %v706, 2
          %v712 = vxor.u32 %v703, 2147483648
          %v713 = vsel %vm711, %v712, %v704
          %v714 = vsel %vm707, %v710, %v713
          %v715 = vsel %vm705, nan, %v714
          %v716 = vand.u32 2147483647, %v186
          %vm717 = vcmp.le.f32.partialorder %v716, 0.7853982
          %vm718 = vcmp.lt.s32.totalorder %v186, 0
          %v719 = vand.u32 %v186, 2139095040
          %v720 = vshrl.u32 %v719, 23
          %v721 = vsub.s32 %v720, 127
          %v722 = vand.u32 2147483647, %v186
          %v723 = vand.u32 %v722, 8388607
          %v724 = vor.u32 %v723, 8388608
          %v725 = vsub.s32 0, %v724
          %v726 = vadd.s32 %v721, 1
          %vm727 = vcmp.gt.s32.totalorder %v726, 0
          %v728 = vsel %vm727, %v726, 0
          %v729 = vshrl.u32 %v728, 5
          %v730 = vand.u32 %v728, 31
          %v731 = vsub.s32 32, %v730
          %v732 = vshrl.u32 683565275, %v731
          %v733 = vshll.u32 683565275, %v730
          %v734 = vshrl.u32 2475754826, %v731
          %v735 = vor.u32 %v733, %v734
          %v736 = vshll.u32 2475754826, %v730
          %v737 = vshrl.u32 2131351028, %v731
          %v738 = vor.u32 %v736, %v737
          %v739 = vshll.u32 2131351028, %v730
          %v740 = vshrl.u32 2102212464, %v731
          %v741 = vor.u32 %v739, %v740
          %v742 = vshll.u32 2102212464, %v730
          %v743 = vshrl.u32 920167782, %v731
          %v744 = vor.u32 %v742, %v743
          %v745 = vshll.u32 920167782, %v730
          %v746 = vshrl.u32 1326507024, %v731
          %v747 = vor.u32 %v745, %v746
          %vm748 = vcmp.lt.s32.totalorder %v729, 1
          %vm749 = vcmp.lt.s32.totalorder %v729, 2
          %vm750 = vcmp.lt.s32.totalorder %v729, 3
          %vm751 = vcmp.lt.s32.totalorder %v729, 4
          %v752 = vsel %vm748, %v732, %v735
          %v753 = vsel %vm751, %v741, 2102212464
          %v754 = vsel %vm750, %v738, %v753
          %v755 = vsel %vm749, %v752, %v754
          %v756 = vsel %vm748, %v735, %v738
          %v757 = vsel %vm751, %v744, 920167782
          %v758 = vsel %vm750, %v741, %v757
          %v759 = vsel %vm749, %v756, %v758
          %v760 = vsel %vm748, %v738, %v741
          %v761 = vsel %vm751, %v747, 1326507024
          %v762 = vsel %vm750, %v744, %v761
          %v763 = vsel %vm749, %v760, %v762
          %v764 = vshll.u32 %v724, 8
          %v765 = vmul.u32.u64.compose %v764, %v763
          %v766 = vextract.low.u32 %v765
          %v767 = vextract.high.u32 %v765
          %v768 = vmul.u32.u64.compose %v764, %v759
          %v769 = vextract.low.u32 %v768
          %v770 = vextract.high.u32 %v768
          %v771 = vmul.u32 %v764, %v755
          %v772 = vadd.s32 %v767, %v769
          %vm773 = vc.u32 %v767, %v769
          %v774 = vadd.s32 %v770, 1
          %v775 = vsel %vm773, %v774, %v770
          %v776 = vadd.s32 %v771, %v775
          %v777 = vadd.s32 %v776, 536870912
          %v778 = vshrl.u32 %v777, 30
          %v779 = vshll.u32 %v778, 30
          %v780 = vsub.s32 %v776, %v779
          %vm781 = vcmp.lt.s32.totalorder %v780, 0
          %v782 = vsub.s32 0, %v780
          %v783 = vsel %vm781, %v782, %v780
          %v784 = vclz %v783
          %v785 = vsub.s32 %v784, 2
          %vm786 = vcmp.gt.s32.totalorder 0, %v785
          %v787 = vsel %vm786, 0, %v785
          %v788 = vsub.s32 32, %v787
          %v789 = vshll.u32 %v780, %v787
          %v790 = vshrl.u32 %v772, %v788
          %v791 = vor.u32 %v789, %v790
          %v792 = vsub.s32 4294967266, %v787
          %v793 = vadd.s32 %v792, 127
          %v794 = vshll.u32 %v793, 23
          %v795 = vor.u32 4788187, %v794
          %v796 = vand.u32 2147483647, %v795
          %v798 = vcvt.s32.f32 %v791
          %v799 = vmul.f32 %v798, %v796
          %v800 = vxor.u32 %v799, 2147483648
          %v801 = vsel %vm718, %v800, %v799
          %v802 = vsub.s32 4, %v778
          %v803 = vsel %vm718, %v802, %v778
          %v804 = vsel %vm717, %v186, %v801
          %v805 = vsel %vm717, 0, %v803
          %v806 = vcosq.f32.pop %v804
          %v807 = vsinq.f32.pop %v804
          %vm808 = vweird.f32 %v186
          %v809 = vand.u32 %v805, 3
          %vm810 = vcmp.lt.s32.totalorder %v809, 2
          %vm811 = vcmp.eq.s32.totalorder %v809, 0
          %v812 = vxor.u32 %v807, 2147483648
          %v813 = vsel %vm811, %v806, %v812
          %vm814 = vcmp.eq.s32.totalorder %v809, 2
          %v815 = vxor.u32 %v806, 2147483648
          %v816 = vsel %vm814, %v815, %v807
          %v817 = vsel %vm810, %v813, %v816
          %v818 = vsel %vm808, nan, %v817
          %819 = vst [vmem:[%s151] sm:$0xff] %v612
          %820 = vst [vmem:[%s151 + $0x8] sm:$0xff] %v715
          %821 = vst [vmem:[%s151 + $0x10] sm:$0xff] %v818
        $region36: #{tpu_custom_call.1} parent=27 // pred_fallthru
          _
        %s822 = sand.u32 %s85, 1
        %s823 = scalar_lea.sflag [#allocation3], %s822
        %s824 = sand.u32 %s85, 1
        %s825 = smul.addr %s824, 24
        %s826 = scalar_lea.vmem [#allocation2], %s825
        // Predicated region
        $region37: #{tpu_custom_call.1} parent=27 // pred_check
          %p827 = pneg %p95
        $region38: #{tpu_custom_call.1} parent=27 // pred_check_branch
          %829 = sbr.rel (%p827) target = $region40
        $region39: #{tpu_custom_call.1} parent=27 // pred_region
          %s830 = smul.u32 3, %s20
          %s832 = ssub.s32 384, 384
          %833 = vsyncadd %s823, %s832
          %s834 = smul.addr %s830, 2
          %s835 = sadd.s32 %s21, %s834
          %s836 = smul.addr %s835, 128
          %s837 = scalar_lea.hbm %s2, %s836
          %s838 = sshll.u32 %s826, 4
          %s839 = int_to_ptr.vmem [resolvable:$true] %s838
          %844 = dma.vmem_to_hbm [thread:$0]  %s839, 384, %s837, %s823, 128, 256, 8
        $region40: #{tpu_custom_call.1} parent=27 // pred_fallthru
          _
      $region28: #{tpu_custom_call.1} parent=5 // pred_fallthru
        _
      %p845 = scmp.le.s32.totalorder 2, %s11
      // Predicated region
      $region41: #{tpu_custom_call.1} parent=5 // pred_check
        %p846 = pneg %p845
      $region42: #{tpu_custom_call.1} parent=5 // pred_check_branch
        %848 = sbr.rel (%p846) target = $region44
      $region43: #{tpu_custom_call.1} parent=5 // pred_region
        %s849 = ssub.s32 %s11, 2
        // Predicated region
        $region45: #{tpu_custom_call.1} parent=43 // pred_check
          %p850 = pneg %p101
        $region46: #{tpu_custom_call.1} parent=43 // pred_check_branch
          %852 = sbr.rel (%p850) target = $region48
        $region47: #{tpu_custom_call.1} parent=43 // pred_region
          %s853 = sand.u32 %s86, 1
          %s854 = scalar_lea.sflag [#allocation3], %s853
          %s855 = sand.u32 %s86, 1
          %s856 = smul.addr %s855, 24
          %s857 = scalar_lea.vmem [#allocation2], %s856
          %858 = dma.done %s854, 384
        $region48: #{tpu_custom_call.1} parent=43 // pred_fallthru
          _
      $region44: #{tpu_custom_call.1} parent=5 // pred_fallthru
        _
    $region6: #{tpu_custom_call.1} parent=1 // loop_footer
      %s15 = sadd.s32 1, %s11
    $region7: #{tpu_custom_call.1} parent=1 // loop_footer_branch
      %10 = sbr.rel target = $region3
    $region8: #{tpu_custom_call.1} parent=1 // loop_exit
      _
    %859 = vsyncpa [#allocation3], 1
    %s860 = scalar_lea.sflag [#allocation3], 1
    %861 = vsyncpa %s860, 1

</llo_original>
